<compile_context>
chip_gen: v5e
topology: v5e:2x2
jax: 0.10.0
libtpu: 0.0.40
codegen_flags: <defaults>
</compile_context>

<pallas_src>
import jax
import jax.numpy as jnp
from jax.experimental import pallas as pl
from jax.experimental.pallas import tpu as pltpu

O_CH = 32      # ConvBlock output channels
FC1_IN = 512   # fc1 in_features  (== O_CH * Lp)
FC1_OUT = 256  # fc1 out_features


def _round_up(a: int, b: int) -> int:
    return (a + b - 1) // b * b


# --------------------------------------------------------------------------- #
# Kernel: three lane-dense matmuls (bf16 operands, f32 accumulation).
# --------------------------------------------------------------------------- #
def _inception_aux_kernel(x_ref, a_ref, shift_ref, w1_ref, b1_ref,
                          w2_ref, b2_ref, out_ref):
    # x_ref: (TILE_N, CLp) bf16 -- one batch tile, lane-dense, zero-padded cols.
    x = x_ref[...]
    # AvgPool(5,3) + 1x1 conv + eval-BN (scale folded into A; bias/mean/beta in shift).
    h = jnp.dot(x, a_ref[...], preferred_element_type=jnp.float32) + shift_ref[...]
    h = jnp.maximum(h, 0.0).astype(jnp.bfloat16)                   # (TILE_N, 512)
    # fc1 (512 -> 256) + ReLU.  Dropout(p=0.7) is the identity at inference time.
    z = jnp.dot(h, w1_ref[...], preferred_element_type=jnp.float32) + b1_ref[...]
    z = jnp.maximum(z, 0.0).astype(jnp.bfloat16)                   # (TILE_N, 256)
    # fc2 (256 -> Kp), Kp padded up to a lane-dense multiple of 128.
    out = jnp.dot(z, w2_ref[...], preferred_element_type=jnp.float32) + b2_ref[...]
    out_ref[...] = out.astype(out_ref.dtype)                       # (TILE_N, Kp)


# --------------------------------------------------------------------------- #
# One-time offline folding of AvgPool1d(5,3) + Conv1d(k=1) + eval BatchNorm.
# Call once at init; the result is reused by every forward call.
# --------------------------------------------------------------------------- #
def fold_inception_aux_params(params, C, L, *, eps=1e-5):
    Lp = (L - 5) // 3 + 1
    assert O_CH * Lp == FC1_IN, "flattened conv output must equal fc1 in_features=512"
    K = params['fc2_w'].shape[0]

    # pool[l, q] = 1/5 if 3q <= l < 3q+5 else 0   (so pooled = x @ pool)
    l_idx = jnp.arange(L)[:, None]
    q_idx = jnp.arange(Lp)[None, :]
    pool = (((l_idx >= 3 * q_idx) & (l_idx < 3 * q_idx + 5))
            .astype(jnp.float32) / 5.0)                            # (L, Lp)
    cw = params['conv_w'][:, :, 0]                                 # (O, C)
    scale = params['bn_gamma'] / jnp.sqrt(params['bn_var'] + eps)  # (O,)
    cw_s = scale[:, None] * cw                                     # BN scale folded in
    # A[c*L + l, o*Lp + q] = scale[o] * cw[o, c] * pool[l, q]
    A = jnp.einsum('oc,lq->cloq', cw_s, pool).reshape(C * L, FC1_IN)
    CL = C * L
    CLp = _round_up(CL, 256)                                       # lane/contraction pad
    if CLp != CL:
        A = jnp.pad(A, ((0, CLp - CL), (0, 0)))
    shift = scale * (params['conv_b'] - params['bn_mean']) + params['bn_beta']
    shift_row = jnp.repeat(shift, Lp).reshape(1, FC1_IN)           # (1, 512)

    # fc1 / fc2 weights, lane-dense. PyTorch flatten order of the conv output is
    # o*Lp + q, which is exactly A's column order, so fc1_w.T needs no permutation.
    w1 = params['fc1_w'].T                                         # (512, 256)
    b1 = params['fc1_b'].reshape(1, FC1_OUT)
    Kp = _round_up(max(K, 1), 128)
    w2 = jnp.zeros((FC1_OUT, Kp), jnp.float32).at[:, :K].set(params['fc2_w'].T)
    b2 = jnp.zeros((1, Kp), jnp.float32).at[:, :K].set(params['fc2_b'])

    return {
        'A': A.astype(jnp.bfloat16),        # (CLp, 512) bf16 MXU operand
        'shift': shift_row,                 # (1, 512)   f32
        'w1': w1.astype(jnp.bfloat16),      # (512, 256) bf16
        'b1': b1,                           # (1, 256)   f32
        'w2': w2.astype(jnp.bfloat16),      # (256, Kp)  bf16
        'b2': b2,                           # (1, Kp)    f32
        'C': C, 'L': L, 'CL': CL, 'CLp': CLp, 'K': K, 'Kp': Kp,
    }


def _choose_tile(N, tile_n_max):
    """Balanced batch tiling: minimal padding, MXU-friendly granularity,
    and >=2 grid steps for moderate batches (keeps both v7x TCs busy)."""
    n_steps = max(1, -(-N // tile_n_max))
    if n_steps == 1 and N > 256:
        n_steps = 2
    per = -(-N // n_steps)
    granule = 256 if per > 128 else 8       # MXU M width vs. small-batch pad
    tile_n = _round_up(per, granule)
    while n_steps > 1 and tile_n * (n_steps - 1) >= N:
        n_steps -= 1                        # drop fully-padded tail steps
    return tile_n, tile_n * n_steps


# --------------------------------------------------------------------------- #
# Forward: batch-pad, tile, run the Pallas kernel.  `folded` comes from
# fold_inception_aux_params() (computed once, not per call).
# --------------------------------------------------------------------------- #
def inception_aux_forward(x, folded, *, tile_n_max=1024):
    """x: (N, C, L) float32 in NCL layout (PyTorch Conv1d convention)."""
    N, C, L = x.shape
    assert C == folded['C'] and L == folded['L']
    CL, CLp, K, Kp = folded['CL'], folded['CLp'], folded['K'], folded['Kp']

    tile_n, n_pad = _choose_tile(N, tile_n_max)
    x_flat = x.reshape(N, CL).astype(jnp.bfloat16)
    x_flat = jnp.pad(x_flat, ((0, n_pad - N), (0, CLp - CL)))

    def full(shape):
        return pl.BlockSpec(shape, lambda i: (0,) * len(shape))

    out = pl.pallas_call(
        _inception_aux_kernel,
        out_shape=jax.ShapeDtypeStruct((n_pad, Kp), jnp.float32),
        grid=(n_pad // tile_n,),
        in_specs=[
            pl.BlockSpec((tile_n, CLp), lambda i: (i, 0)),   # x tile (bf16)
            full((CLp, FC1_IN)),                             # folded pool+conv+BN
            full((1, FC1_IN)),                               # shift row
            full((FC1_IN, FC1_OUT)),                         # fc1 weight
            full((1, FC1_OUT)),                              # fc1 bias
            full((FC1_OUT, Kp)),                             # fc2 weight (padded)
            full((1, Kp)),                                   # fc2 bias (padded)
        ],
        out_specs=pl.BlockSpec((tile_n, Kp), lambda i: (i, 0)),
        compiler_params=pltpu.CompilerParams(
            dimension_semantics=("parallel",)),
    )(x_flat, folded['A'], folded['shift'], folded['w1'], folded['b1'],
      folded['w2'], folded['b2'])
    return out[:N, :K]


def inception_aux_reference(x, params, eps=1e-5):
    """Pure-JAX reference mirroring the PyTorch forward (eval mode)."""
    N, C, L = x.shape
    Lp = (L - 5) // 3 + 1
    pooled = jnp.stack([x[:, :, 3 * i:3 * i + 5].mean(axis=-1)
                        for i in range(Lp)], axis=-1)               # (N, C, Lp)
    cw = params['conv_w'][:, :, 0]
    y = jnp.einsum('ncq,oc->noq', pooled, cw) + params['conv_b'][None, :, None]
    y = (y - params['bn_mean'][None, :, None]) / jnp.sqrt(
        params['bn_var'][None, :, None] + eps)
    y = y * params['bn_gamma'][None, :, None] + params['bn_beta'][None, :, None]
    y = jnp.maximum(y, 0.0)
    y = y.reshape(N, -1)                                            # (N, 512)
    z1 = jnp.maximum(y @ params['fc1_w'].T + params['fc1_b'], 0.0)  # (N, 256)
    return z1 @ params['fc2_w'].T + params['fc2_b']                 # (N, K)


if __name__ == "__main__":
    N, C, L, K = 2, 4, 50, 8          # (L-5)//3 + 1 = 16  ->  32*16 = 512
    key = jax.random.PRNGKey(0)
    ks = jax.random.split(key, 9)
    params = {
        'conv_w': 0.2 * jax.random.normal(ks[0], (O_CH, C, 1), jnp.float32),
        'conv_b': 0.1 * jax.random.normal(ks[1], (O_CH,), jnp.float32),
        'bn_gamma': 1.0 + 0.1 * jax.random.normal(ks[2], (O_CH,), jnp.float32),
        'bn_beta': 0.1 * jax.random.normal(ks[3], (O_CH,), jnp.float32),
        'bn_mean': jnp.zeros((O_CH,), jnp.float32),
        'bn_var': jnp.ones((O_CH,), jnp.float32),
        'fc1_w': jax.random.normal(ks[4], (FC1_OUT, FC1_IN), jnp.float32) / jnp.sqrt(512.0),
        'fc1_b': 0.1 * jax.random.normal(ks[5], (FC1_OUT,), jnp.float32),
        'fc2_w': jax.random.normal(ks[6], (K, FC1_OUT), jnp.float32) / jnp.sqrt(256.0),
        'fc2_b': 0.1 * jax.random.normal(ks[7], (K,), jnp.float32),
    }
    x = jax.random.normal(ks[8], (N, C, L), jnp.float32)

    # Offline folding done ONCE (not per forward call).
    folded = jax.tree_util.tree_map(
        lambda v: jax.block_until_ready(v) if isinstance(v, jax.Array) else v,
        fold_inception_aux_params(params, C, L))

    out = jax.block_until_ready(inception_aux_forward(x, folded))
    ref = jax.block_until_ready(inception_aux_reference(x, params))
    assert out.shape == (N, K)
    # bf16 MXU operands with f32 accumulation: relaxed tolerance vs. f32 reference.
    assert bool(jnp.allclose(out, ref, rtol=5e-2, atol=5e-2)), (out, ref)
    print("KERNEL_OK")
</pallas_src>

<mosaic_0001>
module attributes {stable_mosaic.version = 11 : i64} {
  func.func @_inception_aux_kernel(%arg0: i32, %arg1: memref<8x256xbf16, #tpu.memory_space<vmem>>, %arg2: memref<256x512xbf16, #tpu.memory_space<vmem>>, %arg3: memref<1x512xf32, #tpu.memory_space<vmem>>, %arg4: memref<512x256xbf16, #tpu.memory_space<vmem>>, %arg5: memref<1x256xf32, #tpu.memory_space<vmem>>, %arg6: memref<256x128xbf16, #tpu.memory_space<vmem>>, %arg7: memref<1x128xf32, #tpu.memory_space<vmem>>, %arg8: memref<8x128xf32, #tpu.memory_space<vmem>>) attributes {dimension_semantics = [#tpu.dimension_semantics<parallel>], iteration_bounds = array<i64: 1>, scalar_prefetch = 0 : i64, scratch_operands = 0 : i64, tpu.core_type = #tpu.core_type<tc>, window_params = [{transform_indices = @transform_0, window_bounds = array<i64: 8, 256>}, {pipeline_mode = #tpu.pipeline_mode<synchronous>, transform_indices = @transform_1, window_bounds = array<i64: 256, 512>}, {pipeline_mode = #tpu.pipeline_mode<synchronous>, transform_indices = @transform_2, window_bounds = array<i64: 1, 512>}, {pipeline_mode = #tpu.pipeline_mode<synchronous>, transform_indices = @transform_3, window_bounds = array<i64: 512, 256>}, {pipeline_mode = #tpu.pipeline_mode<synchronous>, transform_indices = @transform_4, window_bounds = array<i64: 1, 256>}, {pipeline_mode = #tpu.pipeline_mode<synchronous>, transform_indices = @transform_5, window_bounds = array<i64: 256, 128>}, {pipeline_mode = #tpu.pipeline_mode<synchronous>, transform_indices = @transform_6, window_bounds = array<i64: 1, 128>}, {transform_indices = @transform_7, window_bounds = array<i64: 8, 128>}]} {
    %c0 = arith.constant 0 : index
    %c0_0 = arith.constant 0 : index
    %0 = vector.load %arg1[%c0, %c0_0] : memref<8x256xbf16, #tpu.memory_space<vmem>>, vector<8x256xbf16>
    %c0_1 = arith.constant 0 : index
    %c0_2 = arith.constant 0 : index
    %1 = vector.load %arg2[%c0_1, %c0_2] : memref<256x512xbf16, #tpu.memory_space<vmem>>, vector<256x512xbf16>
    %cst = arith.constant dense<0.000000e+00> : vector<8x512xf32>
    %2 = tpu.matmul %0, %1, %cst {dimension_numbers = #tpu.dot_dimension_numbers<[1], [0], [0], [1], [0, 0, 1, 1], [], []>} : vector<8x256xbf16>, vector<256x512xbf16>, vector<8x512xf32> -> vector<8x512xf32>
    %c0_3 = arith.constant 0 : index
    %c0_4 = arith.constant 0 : index
    %3 = vector.load %arg3[%c0_3, %c0_4] : memref<1x512xf32, #tpu.memory_space<vmem>>, vector<1x512xf32>
    %4 = vector.broadcast %3 : vector<1x512xf32> to vector<8x512xf32>
    %5 = arith.addf %2, %4 : vector<8x512xf32>
    %cst_5 = arith.constant 0.000000e+00 : f32
    %6 = vector.broadcast %cst_5 : f32 to vector<8x512xf32>
    %7 = arith.maximumf %5, %6 : vector<8x512xf32>
    %8 = arith.truncf %7 : vector<8x512xf32> to vector<8x512xbf16>
    %c0_6 = arith.constant 0 : index
    %c0_7 = arith.constant 0 : index
    %9 = vector.load %arg4[%c0_6, %c0_7] : memref<512x256xbf16, #tpu.memory_space<vmem>>, vector<512x256xbf16>
    %cst_8 = arith.constant dense<0.000000e+00> : vector<8x256xf32>
    %10 = tpu.matmul %8, %9, %cst_8 {dimension_numbers = #tpu.dot_dimension_numbers<[1], [0], [0], [1], [0, 0, 1, 1], [], []>} : vector<8x512xbf16>, vector<512x256xbf16>, vector<8x256xf32> -> vector<8x256xf32>
    %c0_9 = arith.constant 0 : index
    %c0_10 = arith.constant 0 : index
    %11 = vector.load %arg5[%c0_9, %c0_10] : memref<1x256xf32, #tpu.memory_space<vmem>>, vector<1x256xf32>
    %12 = vector.broadcast %11 : vector<1x256xf32> to vector<8x256xf32>
    %13 = arith.addf %10, %12 : vector<8x256xf32>
    %cst_11 = arith.constant 0.000000e+00 : f32
    %14 = vector.broadcast %cst_11 : f32 to vector<8x256xf32>
    %15 = arith.maximumf %13, %14 : vector<8x256xf32>
    %16 = arith.truncf %15 : vector<8x256xf32> to vector<8x256xbf16>
    %c0_12 = arith.constant 0 : index
    %c0_13 = arith.constant 0 : index
    %17 = vector.load %arg6[%c0_12, %c0_13] : memref<256x128xbf16, #tpu.memory_space<vmem>>, vector<256x128xbf16>
    %cst_14 = arith.constant dense<0.000000e+00> : vector<8x128xf32>
    %18 = tpu.matmul %16, %17, %cst_14 {dimension_numbers = #tpu.dot_dimension_numbers<[1], [0], [0], [1], [0, 0, 1, 1], [], []>} : vector<8x256xbf16>, vector<256x128xbf16>, vector<8x128xf32> -> vector<8x128xf32>
    %c0_15 = arith.constant 0 : index
    %c0_16 = arith.constant 0 : index
    %19 = vector.load %arg7[%c0_15, %c0_16] : memref<1x128xf32, #tpu.memory_space<vmem>>, vector<1x128xf32>
    %20 = vector.broadcast %19 : vector<1x128xf32> to vector<8x128xf32>
    %21 = arith.addf %18, %20 : vector<8x128xf32>
    %c0_17 = arith.constant 0 : index
    %c0_18 = arith.constant 0 : index
    %22 = vector.load %arg8[%c0_17, %c0_18] : memref<8x128xf32, #tpu.memory_space<vmem>>, vector<8x128xf32>
    tpu.vector_store %arg8[%c0_17, %c0_18], %21 {strides = array<i32>} : memref<8x128xf32, #tpu.memory_space<vmem>>, vector<8x128xf32>,
    return
  }
  func.func @transform_0(%arg0: i32) -> (i32, i32) {
    %c0_i32 = arith.constant 0 : i32
    %c0_i32_0 = arith.constant 0 : i32
    return %arg0, %c0_i32 : i32, i32
  }
  func.func @transform_1(%arg0: i32) -> (i32, i32) {
    %c0_i32 = arith.constant 0 : i32
    %c0_i32_0 = arith.constant 0 : i32
    %c0_i32_1 = arith.constant 0 : i32
    return %c0_i32, %c0_i32_0 : i32, i32
  }
  func.func @transform_2(%arg0: i32) -> (i32, i32) {
    %c0_i32 = arith.constant 0 : i32
    %c0_i32_0 = arith.constant 0 : i32
    %c0_i32_1 = arith.constant 0 : i32
    return %c0_i32, %c0_i32_0 : i32, i32
  }
  func.func @transform_3(%arg0: i32) -> (i32, i32) {
    %c0_i32 = arith.constant 0 : i32
    %c0_i32_0 = arith.constant 0 : i32
    %c0_i32_1 = arith.constant 0 : i32
    return %c0_i32, %c0_i32_0 : i32, i32
  }
  func.func @transform_4(%arg0: i32) -> (i32, i32) {
    %c0_i32 = arith.constant 0 : i32
    %c0_i32_0 = arith.constant 0 : i32
    %c0_i32_1 = arith.constant 0 : i32
    return %c0_i32, %c0_i32_0 : i32, i32
  }
  func.func @transform_5(%arg0: i32) -> (i32, i32) {
    %c0_i32 = arith.constant 0 : i32
    %c0_i32_0 = arith.constant 0 : i32
    %c0_i32_1 = arith.constant 0 : i32
    return %c0_i32, %c0_i32_0 : i32, i32
  }
  func.func @transform_6(%arg0: i32) -> (i32, i32) {
    %c0_i32 = arith.constant 0 : i32
    %c0_i32_0 = arith.constant 0 : i32
    %c0_i32_1 = arith.constant 0 : i32
    return %c0_i32, %c0_i32_0 : i32, i32
  }
  func.func @transform_7(%arg0: i32) -> (i32, i32) {
    %c0_i32 = arith.constant 0 : i32
    %c0_i32_0 = arith.constant 0 : i32
    return %arg0, %c0_i32 : i32, i32
  }
}

</mosaic_0001>

<llo_original>
// kernel: tpu_custom_call.1
$region0: #{tpu_custom_call.1}
  #allocation0 [shape = 'u32[]', space=smem, size = 0x4, offset = 0x4, fixed_abs, tag = 'smem constant byte address 0x4 - core index']
  #allocation1 [shape = 'u32[72,128]{1,0:T(1,128)}', space=vmem, size = 0x9000, scoped, tag = 'internal scratch']
  %s0 = inlined_call_operand.hbm [shape: bf16[8,256], index: 0, kind: input, shape index: {}]
  %s1 = inlined_call_operand.hbm [shape: bf16[256,512], index: 1, kind: input, shape index: {}]
  %s2 = inlined_call_operand.hbm [shape: f32[1,512], index: 2, kind: input, shape index: {}]
  %s3 = inlined_call_operand.hbm [shape: bf16[512,256], index: 3, kind: input, shape index: {}]
  %s4 = inlined_call_operand.vmem [shape: f32[1,256], index: 4, kind: input, shape index: {}]
  %s5 = inlined_call_operand.hbm [shape: bf16[256,128], index: 5, kind: input, shape index: {}]
  %s6 = inlined_call_operand.vmem [shape: f32[1,128], index: 6, kind: input, shape index: {}]
  %s7 = inlined_call_operand.hbm [shape: f32[8,128], index: 7, kind: output, shape index: {}]
  %s8 = sld [smem:[#allocation0]]
  $region58: #{tpu_custom_call.1} parent=0
    _
  %s10 = ssub.s32 1, %s8
  %s11 = scalar_select 0, %s10, %s8
  $region1: #{tpu_custom_call.1} parent=0
    #allocation2 [shape = 'u8[4096]{0}', space=vmem, size = 0x1000, scoped, tag = 'input window, operand 0, single buffered']
    #allocation3 [shape = 's32[1]{0}', space=sflag, size = 0x4, scoped, tag = 'scoped memory for tpu_custom_call.1']
    #allocation4 [shape = 's32[1]{0}', space=sflag, size = 0x4, scoped, tag = 'scoped memory for tpu_custom_call.1']
    #allocation5 [shape = 'u8[262144]{0}', space=vmem, size = 0x40000, scoped, tag = 'input window, operand 1, single buffered']
    #allocation6 [shape = 's32[1]{0}', space=sflag, size = 0x4, scoped, tag = 'scoped memory for tpu_custom_call.1']
    #allocation7 [shape = 'u8[2048]{0}', space=vmem, size = 0x800, scoped, tag = 'input window, operand 2, single buffered']
    #allocation8 [shape = 'u8[262144]{0}', space=vmem, size = 0x40000, scoped, tag = 'input window, operand 3, single buffered']
    #allocation9 [shape = 's32[1]{0}', space=sflag, size = 0x4, scoped, tag = 'scoped memory for tpu_custom_call.1']
    #allocation10 [shape = 'u8[65536]{0}', space=vmem, size = 0x10000, scoped, tag = 'input window, operand 5, single buffered']
    #allocation11 [shape = 'u8[4096]{0}', space=vmem, size = 0x1000, scoped, tag = 'output window, operand 0, single buffered']
    %12 = vsyncpa [#allocation3], 0
    %13 = vsyncpa [#allocation6], 0
    %14 = vsyncpa [#allocation9], 0
    %15 = vsyncpa [#allocation4], 0
    // Predicated region
    $region2: #{tpu_custom_call.1} parent=1 // pred_check
      _
    $region3: #{tpu_custom_call.1} parent=1 // pred_check_branch
      %17 = sbr.rel (0) target = $region5
    $region4: #{tpu_custom_call.1} parent=1 // pred_region
      %19 = vsyncadd [#allocation3], 0
      %s21 = sshll.u32 %s0, 4
      %s22 = int_to_ptr.hbm [resolvable:$true] %s21
      %s23 = sshll.u32 [#allocation2], 4
      %s24 = int_to_ptr.vmem [resolvable:$true] %s23
      %26 = dma.hbm_to_vmem [thread:$0]  %s22, 128, %s24, [#allocation3]
    $region5: #{tpu_custom_call.1} parent=1 // pred_fallthru
      _
    // Predicated region
    $region6: #{tpu_custom_call.1} parent=1 // pred_check
      _
    $region7: #{tpu_custom_call.1} parent=1 // pred_check_branch
      %28 = sbr.rel (0) target = $region9
    $region8: #{tpu_custom_call.1} parent=1 // pred_region
      %30 = vsyncadd [#allocation6], 0
      %s31 = sshll.u32 %s1, 4
      %s32 = int_to_ptr.hbm [resolvable:$true] %s31
      %s33 = sshll.u32 [#allocation5], 4
      %s34 = int_to_ptr.vmem [resolvable:$true] %s33
      %39 = dma.hbm_to_vmem [thread:$0]  %s32, 8192, %s34, [#allocation6], 256, 256, 16
    $region9: #{tpu_custom_call.1} parent=1 // pred_fallthru
      _
    // Predicated region
    $region10: #{tpu_custom_call.1} parent=1 // pred_check
      _
    $region11: #{tpu_custom_call.1} parent=1 // pred_check_branch
      %41 = sbr.rel (0) target = $region13
    $region12: #{tpu_custom_call.1} parent=1 // pred_region
      %43 = vsyncadd [#allocation6], 0
      %s45 = sshll.u32 %s2, 4
      %s46 = int_to_ptr.hbm [resolvable:$true] %s45
      %s47 = sshll.u32 [#allocation7], 4
      %s48 = int_to_ptr.vmem [resolvable:$true] %s47
      %50 = dma.hbm_to_vmem [thread:$0]  %s46, 64, %s48, [#allocation6]
    $region13: #{tpu_custom_call.1} parent=1 // pred_fallthru
      _
    // Predicated region
    $region14: #{tpu_custom_call.1} parent=1 // pred_check
      _
    $region15: #{tpu_custom_call.1} parent=1 // pred_check_branch
      %52 = sbr.rel (0) target = $region17
    $region16: #{tpu_custom_call.1} parent=1 // pred_region
      %54 = vsyncadd [#allocation9], 0
      %s55 = sshll.u32 %s3, 4
      %s56 = int_to_ptr.hbm [resolvable:$true] %s55
      %s57 = sshll.u32 [#allocation8], 4
      %s58 = int_to_ptr.vmem [resolvable:$true] %s57
      %63 = dma.hbm_to_vmem [thread:$0]  %s56, 8192, %s58, [#allocation9], 128, 128, 8
    $region17: #{tpu_custom_call.1} parent=1 // pred_fallthru
      _
    // Predicated region
    $region18: #{tpu_custom_call.1} parent=1 // pred_check
      _
    $region19: #{tpu_custom_call.1} parent=1 // pred_check_branch
      %65 = sbr.rel (0) target = $region21
    $region20: #{tpu_custom_call.1} parent=1 // pred_region
      _
    $region21: #{tpu_custom_call.1} parent=1 // pred_fallthru
      _
    // Predicated region
    $region22: #{tpu_custom_call.1} parent=1 // pred_check
      _
    $region23: #{tpu_custom_call.1} parent=1 // pred_check_branch
      %67 = sbr.rel (0) target = $region25
    $region24: #{tpu_custom_call.1} parent=1 // pred_region
      %69 = vsyncadd [#allocation9], 0
      %s70 = sshll.u32 %s5, 4
      %s71 = int_to_ptr.hbm [resolvable:$true] %s70
      %s72 = sshll.u32 [#allocation10], 4
      %s73 = int_to_ptr.vmem [resolvable:$true] %s72
      %78 = dma.hbm_to_vmem [thread:$0]  %s71, 2048, %s73, [#allocation9], 64, 64, 4
    $region25: #{tpu_custom_call.1} parent=1 // pred_fallthru
      _
    // Predicated region
    $region26: #{tpu_custom_call.1} parent=1 // pred_check
      _
    $region27: #{tpu_custom_call.1} parent=1 // pred_check_branch
      %80 = sbr.rel (0) target = $region29
    $region28: #{tpu_custom_call.1} parent=1 // pred_region
      _
    $region29: #{tpu_custom_call.1} parent=1 // pred_fallthru
      _
    // Predicated region
    $region30: #{tpu_custom_call.1} parent=1 // pred_check
      _
    $region31: #{tpu_custom_call.1} parent=1 // pred_check_branch
      %82 = sbr.rel (0) target = $region33
    $region32: #{tpu_custom_call.1} parent=1 // pred_region
      %84 = dma.done [#allocation3], 128
    $region33: #{tpu_custom_call.1} parent=1 // pred_fallthru
      _
    // Predicated region
    $region34: #{tpu_custom_call.1} parent=1 // pred_check
      _
    $region35: #{tpu_custom_call.1} parent=1 // pred_check_branch
      %86 = sbr.rel (0) target = $region37
    $region36: #{tpu_custom_call.1} parent=1 // pred_region
      %88 = dma.done [#allocation6], 8192
    $region37: #{tpu_custom_call.1} parent=1 // pred_fallthru
      _
    // Predicated region
    $region38: #{tpu_custom_call.1} parent=1 // pred_check
      _
    $region39: #{tpu_custom_call.1} parent=1 // pred_check_branch
      %90 = sbr.rel (0) target = $region41
    $region40: #{tpu_custom_call.1} parent=1 // pred_region
      %92 = dma.done [#allocation6], 64
    $region41: #{tpu_custom_call.1} parent=1 // pred_fallthru
      _
    // Predicated region
    $region42: #{tpu_custom_call.1} parent=1 // pred_check
      _
    $region43: #{tpu_custom_call.1} parent=1 // pred_check_branch
      %94 = sbr.rel (0) target = $region45
    $region44: #{tpu_custom_call.1} parent=1 // pred_region
      %96 = dma.done [#allocation9], 8192
    $region45: #{tpu_custom_call.1} parent=1 // pred_fallthru
      _
    // Predicated region
    $region46: #{tpu_custom_call.1} parent=1 // pred_check
      _
    $region47: #{tpu_custom_call.1} parent=1 // pred_check_branch
      %98 = sbr.rel (0) target = $region49
    $region48: #{tpu_custom_call.1} parent=1 // pred_region
      %100 = dma.done [#allocation9], 2048
    $region49: #{tpu_custom_call.1} parent=1 // pred_fallthru
      _
    %v101 = vld [vmem:[#allocation2] sm:$0xff]
    %v102 = vld [vmem:[#allocation5] sm:$0xff]
    %v103 = vld [vmem:[#allocation5 + $0x8] sm:$0xff]
    %v104 = vld [vmem:[#allocation5 + $0x10] sm:$0xff]
    %v105 = vld [vmem:[#allocation5 + $0x18] sm:$0xff]
    %v106 = vld [vmem:[#allocation5 + $0x20] sm:$0xff]
    %v107 = vld [vmem:[#allocation5 + $0x28] sm:$0xff]
    %v108 = vld [vmem:[#allocation5 + $0x30] sm:$0xff]
    %v109 = vld [vmem:[#allocation5 + $0x38] sm:$0xff]
    %v110 = vld [vmem:[#allocation5 + $0x40] sm:$0xff]
    %v111 = vld [vmem:[#allocation5 + $0x48] sm:$0xff]
    %v112 = vld [vmem:[#allocation5 + $0x50] sm:$0xff]
    %v113 = vld [vmem:[#allocation5 + $0x58] sm:$0xff]
    %v114 = vld [vmem:[#allocation5 + $0x60] sm:$0xff]
    %v115 = vld [vmem:[#allocation5 + $0x68] sm:$0xff]
    %v116 = vld [vmem:[#allocation5 + $0x70] sm:$0xff]
    %v117 = vld [vmem:[#allocation5 + $0x78] sm:$0xff]
    %v118 = vld [vmem:[#allocation5 + $0x80] sm:$0xff]
    %v119 = vld [vmem:[#allocation5 + $0x88] sm:$0xff]
    %v120 = vld [vmem:[#allocation5 + $0x90] sm:$0xff]
    %v121 = vld [vmem:[#allocation5 + $0x98] sm:$0xff]
    %v122 = vld [vmem:[#allocation5 + $0xa0] sm:$0xff]
    %v123 = vld [vmem:[#allocation5 + $0xa8] sm:$0xff]
    %v124 = vld [vmem:[#allocation5 + $0xb0] sm:$0xff]
    %v125 = vld [vmem:[#allocation5 + $0xb8] sm:$0xff]
    %v126 = vld [vmem:[#allocation5 + $0xc0] sm:$0xff]
    %v127 = vld [vmem:[#allocation5 + $0xc8] sm:$0xff]
    %v128 = vld [vmem:[#allocation5 + $0xd0] sm:$0xff]
    %v129 = vld [vmem:[#allocation5 + $0xd8] sm:$0xff]
    %v130 = vld [vmem:[#allocation5 + $0xe0] sm:$0xff]
    %v131 = vld [vmem:[#allocation5 + $0xe8] sm:$0xff]
    %v132 = vld [vmem:[#allocation5 + $0xf0] sm:$0xff]
    %v133 = vld [vmem:[#allocation5 + $0xf8] sm:$0xff]
    %v134 = vld [vmem:[#allocation5 + $0x100] sm:$0xff]
    %v135 = vld [vmem:[#allocation5 + $0x108] sm:$0xff]
    %v136 = vld [vmem:[#allocation5 + $0x110] sm:$0xff]
    %v137 = vld [vmem:[#allocation5 + $0x118] sm:$0xff]
    %v138 = vld [vmem:[#allocation5 + $0x120] sm:$0xff]
    %v139 = vld [vmem:[#allocation5 + $0x128] sm:$0xff]
    %v140 = vld [vmem:[#allocation5 + $0x130] sm:$0xff]
    %v141 = vld [vmem:[#allocation5 + $0x138] sm:$0xff]
    %v142 = vld [vmem:[#allocation5 + $0x140] sm:$0xff]
    %v143 = vld [vmem:[#allocation5 + $0x148] sm:$0xff]
    %v144 = vld [vmem:[#allocation5 + $0x150] sm:$0xff]
    %v145 = vld [vmem:[#allocation5 + $0x158] sm:$0xff]
    %v146 = vld [vmem:[#allocation5 + $0x160] sm:$0xff]
    %v147 = vld [vmem:[#allocation5 + $0x168] sm:$0xff]
    %v148 = vld [vmem:[#allocation5 + $0x170] sm:$0xff]
    %v149 = vld [vmem:[#allocation5 + $0x178] sm:$0xff]
    %v150 = vld [vmem:[#allocation5 + $0x180] sm:$0xff]
    %v151 = vld [vmem:[#allocation5 + $0x188] sm:$0xff]
    %v152 = vld [vmem:[#allocation5 + $0x190] sm:$0xff]
    %v153 = vld [vmem:[#allocation5 + $0x198] sm:$0xff]
    %v154 = vld [vmem:[#allocation5 + $0x1a0] sm:$0xff]
    %v155 = vld [vmem:[#allocation5 + $0x1a8] sm:$0xff]
    %v156 = vld [vmem:[#allocation5 + $0x1b0] sm:$0xff]
    %v157 = vld [vmem:[#allocation5 + $0x1b8] sm:$0xff]
    %v158 = vld [vmem:[#allocation5 + $0x1c0] sm:$0xff]
    %v159 = vld [vmem:[#allocation5 + $0x1c8] sm:$0xff]
    %v160 = vld [vmem:[#allocation5 + $0x1d0] sm:$0xff]
    %v161 = vld [vmem:[#allocation5 + $0x1d8] sm:$0xff]
    %v162 = vld [vmem:[#allocation5 + $0x1e0] sm:$0xff]
    %v163 = vld [vmem:[#allocation5 + $0x1e8] sm:$0xff]
    %v164 = vld [vmem:[#allocation5 + $0x1f0] sm:$0xff]
    %v165 = vld [vmem:[#allocation5 + $0x1f8] sm:$0xff]
    %v166 = vld [vmem:[#allocation7] sm:$0xf]
    %v168 = vperm.slane %v166, 0
    %v169 = vperm.slane %v166, 1
    %v170 = vperm.slane %v166, 2
    %v171 = vperm.slane %v166, 3
    %v177 = vunpack.c.l.b16 %v101
    %v178 = vunpack.c.h.b16 %v101
    %v179 = vpack.c.b16 %v177, %v177
    %v180 = vpack.c.b16 %v178, %v178
    %v247 = vunpack.c.l.b16 %v102
    %v248 = vunpack.c.h.b16 %v102
    %v249 = vunpack.c.l.b16 %v103
    %v250 = vunpack.c.h.b16 %v103
    %v251 = vunpack.c.l.b16 %v104
    %v252 = vunpack.c.h.b16 %v104
    %v253 = vunpack.c.l.b16 %v105
    %v254 = vunpack.c.h.b16 %v105
    %v255 = vunpack.c.l.b16 %v106
    %v256 = vunpack.c.h.b16 %v106
    %v257 = vunpack.c.l.b16 %v107
    %v258 = vunpack.c.h.b16 %v107
    %v259 = vunpack.c.l.b16 %v108
    %v260 = vunpack.c.h.b16 %v108
    %v261 = vunpack.c.l.b16 %v109
    %v262 = vunpack.c.h.b16 %v109
    %v263 = vunpack.c.l.b16 %v110
    %v264 = vunpack.c.h.b16 %v110
    %v265 = vunpack.c.l.b16 %v111
    %v266 = vunpack.c.h.b16 %v111
    %v267 = vunpack.c.l.b16 %v112
    %v268 = vunpack.c.h.b16 %v112
    %v269 = vunpack.c.l.b16 %v113
    %v270 = vunpack.c.h.b16 %v113
    %v271 = vunpack.c.l.b16 %v114
    %v272 = vunpack.c.h.b16 %v114
    %v273 = vunpack.c.l.b16 %v115
    %v274 = vunpack.c.h.b16 %v115
    %v275 = vunpack.c.l.b16 %v116
    %v276 = vunpack.c.h.b16 %v116
    %v277 = vunpack.c.l.b16 %v117
    %v278 = vunpack.c.h.b16 %v117
    %v279 = vunpack.c.l.b16 %v118
    %v280 = vunpack.c.h.b16 %v118
    %v281 = vunpack.c.l.b16 %v119
    %v282 = vunpack.c.h.b16 %v119
    %v283 = vunpack.c.l.b16 %v120
    %v284 = vunpack.c.h.b16 %v120
    %v285 = vunpack.c.l.b16 %v121
    %v286 = vunpack.c.h.b16 %v121
    %v287 = vunpack.c.l.b16 %v122
    %v288 = vunpack.c.h.b16 %v122
    %v289 = vunpack.c.l.b16 %v123
    %v290 = vunpack.c.h.b16 %v123
    %v291 = vunpack.c.l.b16 %v124
    %v292 = vunpack.c.h.b16 %v124
    %v293 = vunpack.c.l.b16 %v125
    %v294 = vunpack.c.h.b16 %v125
    %v295 = vunpack.c.l.b16 %v126
    %v296 = vunpack.c.h.b16 %v126
    %v297 = vunpack.c.l.b16 %v127
    %v298 = vunpack.c.h.b16 %v127
    %v299 = vunpack.c.l.b16 %v128
    %v300 = vunpack.c.h.b16 %v128
    %v301 = vunpack.c.l.b16 %v129
    %v302 = vunpack.c.h.b16 %v129
    %v303 = vunpack.c.l.b16 %v130
    %v304 = vunpack.c.h.b16 %v130
    %v305 = vunpack.c.l.b16 %v131
    %v306 = vunpack.c.h.b16 %v131
    %v307 = vunpack.c.l.b16 %v132
    %v308 = vunpack.c.h.b16 %v132
    %v309 = vunpack.c.l.b16 %v133
    %v310 = vunpack.c.h.b16 %v133
    %v311 = vunpack.c.l.b16 %v134
    %v312 = vunpack.c.h.b16 %v134
    %v313 = vunpack.c.l.b16 %v135
    %v314 = vunpack.c.h.b16 %v135
    %v315 = vunpack.c.l.b16 %v136
    %v316 = vunpack.c.h.b16 %v136
    %v317 = vunpack.c.l.b16 %v137
    %v318 = vunpack.c.h.b16 %v137
    %v319 = vunpack.c.l.b16 %v138
    %v320 = vunpack.c.h.b16 %v138
    %v321 = vunpack.c.l.b16 %v139
    %v322 = vunpack.c.h.b16 %v139
    %v323 = vunpack.c.l.b16 %v140
    %v324 = vunpack.c.h.b16 %v140
    %v325 = vunpack.c.l.b16 %v141
    %v326 = vunpack.c.h.b16 %v141
    %v327 = vunpack.c.l.b16 %v142
    %v328 = vunpack.c.h.b16 %v142
    %v329 = vunpack.c.l.b16 %v143
    %v330 = vunpack.c.h.b16 %v143
    %v331 = vunpack.c.l.b16 %v144
    %v332 = vunpack.c.h.b16 %v144
    %v333 = vunpack.c.l.b16 %v145
    %v334 = vunpack.c.h.b16 %v145
    %v335 = vunpack.c.l.b16 %v146
    %v336 = vunpack.c.h.b16 %v146
    %v337 = vunpack.c.l.b16 %v147
    %v338 = vunpack.c.h.b16 %v147
    %v339 = vunpack.c.l.b16 %v148
    %v340 = vunpack.c.h.b16 %v148
    %v341 = vunpack.c.l.b16 %v149
    %v342 = vunpack.c.h.b16 %v149
    %v343 = vunpack.c.l.b16 %v150
    %v344 = vunpack.c.h.b16 %v150
    %v345 = vunpack.c.l.b16 %v151
    %v346 = vunpack.c.h.b16 %v151
    %v347 = vunpack.c.l.b16 %v152
    %v348 = vunpack.c.h.b16 %v152
    %v349 = vunpack.c.l.b16 %v153
    %v350 = vunpack.c.h.b16 %v153
    %v351 = vunpack.c.l.b16 %v154
    %v352 = vunpack.c.h.b16 %v154
    %v353 = vunpack.c.l.b16 %v155
    %v354 = vunpack.c.h.b16 %v155
    %v355 = vunpack.c.l.b16 %v156
    %v356 = vunpack.c.h.b16 %v156
    %v357 = vunpack.c.l.b16 %v157
    %v358 = vunpack.c.h.b16 %v157
    %v359 = vunpack.c.l.b16 %v158
    %v360 = vunpack.c.h.b16 %v158
    %v361 = vunpack.c.l.b16 %v159
    %v362 = vunpack.c.h.b16 %v159
    %v363 = vunpack.c.l.b16 %v160
    %v364 = vunpack.c.h.b16 %v160
    %v365 = vunpack.c.l.b16 %v161
    %v366 = vunpack.c.h.b16 %v161
    %v367 = vunpack.c.l.b16 %v162
    %v368 = vunpack.c.h.b16 %v162
    %v369 = vunpack.c.l.b16 %v163
    %v370 = vunpack.c.h.b16 %v163
    %v371 = vunpack.c.l.b16 %v164
    %v372 = vunpack.c.h.b16 %v164
    %v373 = vunpack.c.l.b16 %v165
    %v374 = vunpack.c.h.b16 %v165
    %v375 = vpack.c.b16 %v251, %v247
    %v376 = vpack.c.b16 %v252, %v248
    %v377 = vpack.c.b16 %v253, %v249
    %v378 = vpack.c.b16 %v254, %v250
    %v379 = vpack.c.b16 %v259, %v255
    %v380 = vpack.c.b16 %v260, %v256
    %v381 = vpack.c.b16 %v261, %v257
    %v382 = vpack.c.b16 %v262, %v258
    %v383 = vpack.c.b16 %v267, %v263
    %v384 = vpack.c.b16 %v268, %v264
    %v385 = vpack.c.b16 %v269, %v265
    %v386 = vpack.c.b16 %v270, %v266
    %v387 = vpack.c.b16 %v275, %v271
    %v388 = vpack.c.b16 %v276, %v272
    %v389 = vpack.c.b16 %v277, %v273
    %v390 = vpack.c.b16 %v278, %v274
    %v391 = vpack.c.b16 %v283, %v279
    %v392 = vpack.c.b16 %v284, %v280
    %v393 = vpack.c.b16 %v285, %v281
    %v394 = vpack.c.b16 %v286, %v282
    %v395 = vpack.c.b16 %v291, %v287
    %v396 = vpack.c.b16 %v292, %v288
    %v397 = vpack.c.b16 %v293, %v289
    %v398 = vpack.c.b16 %v294, %v290
    %v399 = vpack.c.b16 %v299, %v295
    %v400 = vpack.c.b16 %v300, %v296
    %v401 = vpack.c.b16 %v301, %v297
    %v402 = vpack.c.b16 %v302, %v298
    %v403 = vpack.c.b16 %v307, %v303
    %v404 = vpack.c.b16 %v308, %v304
    %v405 = vpack.c.b16 %v309, %v305
    %v406 = vpack.c.b16 %v310, %v306
    %v407 = vpack.c.b16 %v315, %v311
    %v408 = vpack.c.b16 %v316, %v312
    %v409 = vpack.c.b16 %v317, %v313
    %v410 = vpack.c.b16 %v318, %v314
    %v411 = vpack.c.b16 %v323, %v319
    %v412 = vpack.c.b16 %v324, %v320
    %v413 = vpack.c.b16 %v325, %v321
    %v414 = vpack.c.b16 %v326, %v322
    %v415 = vpack.c.b16 %v331, %v327
    %v416 = vpack.c.b16 %v332, %v328
    %v417 = vpack.c.b16 %v333, %v329
    %v418 = vpack.c.b16 %v334, %v330
    %v419 = vpack.c.b16 %v339, %v335
    %v420 = vpack.c.b16 %v340, %v336
    %v421 = vpack.c.b16 %v341, %v337
    %v422 = vpack.c.b16 %v342, %v338
    %v423 = vpack.c.b16 %v347, %v343
    %v424 = vpack.c.b16 %v348, %v344
    %v425 = vpack.c.b16 %v349, %v345
    %v426 = vpack.c.b16 %v350, %v346
    %v427 = vpack.c.b16 %v355, %v351
    %v428 = vpack.c.b16 %v356, %v352
    %v429 = vpack.c.b16 %v357, %v353
    %v430 = vpack.c.b16 %v358, %v354
    %v431 = vpack.c.b16 %v363, %v359
    %v432 = vpack.c.b16 %v364, %v360
    %v433 = vpack.c.b16 %v365, %v361
    %v434 = vpack.c.b16 %v366, %v362
    %v435 = vpack.c.b16 %v371, %v367
    %v436 = vpack.c.b16 %v372, %v368
    %v437 = vpack.c.b16 %v373, %v369
    %v438 = vpack.c.b16 %v374, %v370
    %503 = vmatpush.bf16.msra.mxu0 %v403
    %504 = vmatpush.bf16.msra.mxu0 %v399
    %505 = vmatpush.bf16.msra.mxu0 %v395
    %506 = vmatpush.bf16.msra.mxu0 %v391
    %507 = vmatpush.bf16.msra.mxu0 %v387
    %508 = vmatpush.bf16.msra.mxu0 %v383
    %509 = vmatpush.bf16.msra.mxu0 %v379
    %510 = vmatpush.bf16.msra.mxu0 %v375
    %511 = vmatmul.bf16.gmra.mxu0 %v179
    %v512 = vpop.f32.mrf.mxu0
    %v513 = vadd.f32 %v168, %v512
    %v514 = vpop.f32.mrf.mxu0
    %515 = vdwg.mxu0
    %516 = vmatpush.bf16.msra.mxu0 %v435
    %517 = vmatpush.bf16.msra.mxu0 %v431
    %518 = vmatpush.bf16.msra.mxu0 %v427
    %519 = vmatpush.bf16.msra.mxu0 %v423
    %520 = vmatpush.bf16.msra.mxu0 %v419
    %521 = vmatpush.bf16.msra.mxu0 %v415
    %522 = vmatpush.bf16.msra.mxu0 %v411
    %523 = vmatpush.bf16.msra.mxu0 %v407
    %524 = vmatmul.bf16.gmra.mxu0 %v180
    %v525 = vpop.f32.mrf.mxu0
    %v526 = vadd.f32 %v513, %v525
    %v527 = vpop.f32.mrf.mxu0
    %528 = vdwg.mxu0
    %529 = vmatpush.bf16.msra.mxu0 %v404
    %530 = vmatpush.bf16.msra.mxu0 %v400
    %531 = vmatpush.bf16.msra.mxu0 %v396
    %532 = vmatpush.bf16.msra.mxu0 %v392
    %533 = vmatpush.bf16.msra.mxu0 %v388
    %534 = vmatpush.bf16.msra.mxu0 %v384
    %535 = vmatpush.bf16.msra.mxu0 %v380
    %536 = vmatpush.bf16.msra.mxu0 %v376
    %537 = vmatmul.bf16.gmra.mxu0 %v179
    %v538 = vpop.f32.mrf.mxu0
    %v539 = vadd.f32 %v169, %v538
    %v540 = vpop.f32.mrf.mxu0
    %541 = vdwg.mxu0
    %542 = vmatpush.bf16.msra.mxu0 %v436
    %543 = vmatpush.bf16.msra.mxu0 %v432
    %544 = vmatpush.bf16.msra.mxu0 %v428
    %545 = vmatpush.bf16.msra.mxu0 %v424
    %546 = vmatpush.bf16.msra.mxu0 %v420
    %547 = vmatpush.bf16.msra.mxu0 %v416
    %548 = vmatpush.bf16.msra.mxu0 %v412
    %549 = vmatpush.bf16.msra.mxu0 %v408
    %550 = vmatmul.bf16.gmra.mxu0 %v180
    %v551 = vpop.f32.mrf.mxu0
    %v552 = vadd.f32 %v539, %v551
    %v553 = vpop.f32.mrf.mxu0
    %554 = vdwg.mxu0
    %555 = vmatpush.bf16.msra.mxu0 %v405
    %556 = vmatpush.bf16.msra.mxu0 %v401
    %557 = vmatpush.bf16.msra.mxu0 %v397
    %558 = vmatpush.bf16.msra.mxu0 %v393
    %559 = vmatpush.bf16.msra.mxu0 %v389
    %560 = vmatpush.bf16.msra.mxu0 %v385
    %561 = vmatpush.bf16.msra.mxu0 %v381
    %562 = vmatpush.bf16.msra.mxu0 %v377
    %563 = vmatmul.bf16.gmra.mxu0 %v179
    %v564 = vpop.f32.mrf.mxu0
    %v565 = vadd.f32 %v170, %v564
    %v566 = vpop.f32.mrf.mxu0
    %567 = vdwg.mxu0
    %568 = vmatpush.bf16.msra.mxu0 %v437
    %569 = vmatpush.bf16.msra.mxu0 %v433
    %570 = vmatpush.bf16.msra.mxu0 %v429
    %571 = vmatpush.bf16.msra.mxu0 %v425
    %572 = vmatpush.bf16.msra.mxu0 %v421
    %573 = vmatpush.bf16.msra.mxu0 %v417
    %574 = vmatpush.bf16.msra.mxu0 %v413
    %575 = vmatpush.bf16.msra.mxu0 %v409
    %576 = vmatmul.bf16.gmra.mxu0 %v180
    %v577 = vpop.f32.mrf.mxu0
    %v578 = vadd.f32 %v565, %v577
    %v579 = vpop.f32.mrf.mxu0
    %580 = vdwg.mxu0
    %581 = vmatpush.bf16.msra.mxu0 %v406
    %582 = vmatpush.bf16.msra.mxu0 %v402
    %583 = vmatpush.bf16.msra.mxu0 %v398
    %584 = vmatpush.bf16.msra.mxu0 %v394
    %585 = vmatpush.bf16.msra.mxu0 %v390
    %586 = vmatpush.bf16.msra.mxu0 %v386
    %587 = vmatpush.bf16.msra.mxu0 %v382
    %588 = vmatpush.bf16.msra.mxu0 %v378
    %589 = vmatmul.bf16.gmra.mxu0 %v179
    %v590 = vpop.f32.mrf.mxu0
    %v591 = vadd.f32 %v171, %v590
    %v592 = vpop.f32.mrf.mxu0
    %593 = vdwg.mxu0
    %594 = vmatpush.bf16.msra.mxu0 %v438
    %595 = vmatpush.bf16.msra.mxu0 %v434
    %596 = vmatpush.bf16.msra.mxu0 %v430
    %597 = vmatpush.bf16.msra.mxu0 %v426
    %598 = vmatpush.bf16.msra.mxu0 %v422
    %599 = vmatpush.bf16.msra.mxu0 %v418
    %600 = vmatpush.bf16.msra.mxu0 %v414
    %601 = vmatpush.bf16.msra.mxu0 %v410
    %602 = vmatmul.bf16.gmra.mxu0 %v180
    %v603 = vpop.f32.mrf.mxu0
    %v604 = vadd.f32 %v591, %v603
    %v605 = vpop.f32.mrf.mxu0
    %606 = vdwg.mxu0
    %v607 = vmax.f32 %v526, 0.0
    %v608 = vmax.f32 %v552, 0.0
    %v609 = vmax.f32 %v578, 0.0
    %v610 = vmax.f32 %v604, 0.0
    %v611 = vpack.c.bf16 %v607, %v607
    %v612 = vpack.c.bf16 %v608, %v608
    %v613 = vpack.c.bf16 %v609, %v609
    %v614 = vpack.c.bf16 %v610, %v610
    %v615 = vld [vmem:[#allocation8] sm:$0xff]
    %v616 = vld [vmem:[#allocation8 + $0x8] sm:$0xff]
    %v617 = vld [vmem:[#allocation8 + $0x10] sm:$0xff]
    %v618 = vld [vmem:[#allocation8 + $0x18] sm:$0xff]
    %v619 = vld [vmem:[#allocation8 + $0x20] sm:$0xff]
    %v620 = vld [vmem:[#allocation8 + $0x28] sm:$0xff]
    %v621 = vld [vmem:[#allocation8 + $0x30] sm:$0xff]
    %v622 = vld [vmem:[#allocation8 + $0x38] sm:$0xff]
    %v623 = vld [vmem:[#allocation8 + $0x40] sm:$0xff]
    %v624 = vld [vmem:[#allocation8 + $0x48] sm:$0xff]
    %v625 = vld [vmem:[#allocation8 + $0x50] sm:$0xff]
    %v626 = vld [vmem:[#allocation8 + $0x58] sm:$0xff]
    %v627 = vld [vmem:[#allocation8 + $0x60] sm:$0xff]
    %v628 = vld [vmem:[#allocation8 + $0x68] sm:$0xff]
    %v629 = vld [vmem:[#allocation8 + $0x70] sm:$0xff]
    %v630 = vld [vmem:[#allocation8 + $0x78] sm:$0xff]
    %v631 = vld [vmem:[#allocation8 + $0x80] sm:$0xff]
    %v632 = vld [vmem:[#allocation8 + $0x88] sm:$0xff]
    %v633 = vld [vmem:[#allocation8 + $0x90] sm:$0xff]
    %v634 = vld [vmem:[#allocation8 + $0x98] sm:$0xff]
    %v635 = vld [vmem:[#allocation8 + $0xa0] sm:$0xff]
    %v636 = vld [vmem:[#allocation8 + $0xa8] sm:$0xff]
    %v637 = vld [vmem:[#allocation8 + $0xb0] sm:$0xff]
    %v638 = vld [vmem:[#allocation8 + $0xb8] sm:$0xff]
    %v639 = vld [vmem:[#allocation8 + $0xc0] sm:$0xff]
    %v640 = vld [vmem:[#allocation8 + $0xc8] sm:$0xff]
    %v641 = vld [vmem:[#allocation8 + $0xd0] sm:$0xff]
    %v642 = vld [vmem:[#allocation8 + $0xd8] sm:$0xff]
    %v643 = vld [vmem:[#allocation8 + $0xe0] sm:$0xff]
    %v644 = vld [vmem:[#allocation8 + $0xe8] sm:$0xff]
    %v645 = vld [vmem:[#allocation8 + $0xf0] sm:$0xff]
    %v646 = vld [vmem:[#allocation8 + $0xf8] sm:$0xff]
    %v647 = vld [vmem:[#allocation8 + $0x100] sm:$0xff]
    %v648 = vld [vmem:[#allocation8 + $0x108] sm:$0xff]
    %v649 = vld [vmem:[#allocation8 + $0x110] sm:$0xff]
    %v650 = vld [vmem:[#allocation8 + $0x118] sm:$0xff]
    %v651 = vld [vmem:[#allocation8 + $0x120] sm:$0xff]
    %v652 = vld [vmem:[#allocation8 + $0x128] sm:$0xff]
    %v653 = vld [vmem:[#allocation8 + $0x130] sm:$0xff]
    %v654 = vld [vmem:[#allocation8 + $0x138] sm:$0xff]
    %v655 = vld [vmem:[#allocation8 + $0x140] sm:$0xff]
    %v656 = vld [vmem:[#allocation8 + $0x148] sm:$0xff]
    %v657 = vld [vmem:[#allocation8 + $0x150] sm:$0xff]
    %v658 = vld [vmem:[#allocation8 + $0x158] sm:$0xff]
    %v659 = vld [vmem:[#allocation8 + $0x160] sm:$0xff]
    %v660 = vld [vmem:[#allocation8 + $0x168] sm:$0xff]
    %v661 = vld [vmem:[#allocation8 + $0x170] sm:$0xff]
    %v662 = vld [vmem:[#allocation8 + $0x178] sm:$0xff]
    %v663 = vld [vmem:[#allocation8 + $0x180] sm:$0xff]
    %v664 = vld [vmem:[#allocation8 + $0x188] sm:$0xff]
    %v665 = vld [vmem:[#allocation8 + $0x190] sm:$0xff]
    %v666 = vld [vmem:[#allocation8 + $0x198] sm:$0xff]
    %v667 = vld [vmem:[#allocation8 + $0x1a0] sm:$0xff]
    %v668 = vld [vmem:[#allocation8 + $0x1a8] sm:$0xff]
    %v669 = vld [vmem:[#allocation8 + $0x1b0] sm:$0xff]
    %v670 = vld [vmem:[#allocation8 + $0x1b8] sm:$0xff]
    %v671 = vld [vmem:[#allocation8 + $0x1c0] sm:$0xff]
    %v672 = vld [vmem:[#allocation8 + $0x1c8] sm:$0xff]
    %v673 = vld [vmem:[#allocation8 + $0x1d0] sm:$0xff]
    %v674 = vld [vmem:[#allocation8 + $0x1d8] sm:$0xff]
    %v675 = vld [vmem:[#allocation8 + $0x1e0] sm:$0xff]
    %v676 = vld [vmem:[#allocation8 + $0x1e8] sm:$0xff]
    %v677 = vld [vmem:[#allocation8 + $0x1f0] sm:$0xff]
    %v678 = vld [vmem:[#allocation8 + $0x1f8] sm:$0xff]
    %v679 = vld [vmem:[%s4] sm:$0x3]
    %v681 = vperm.slane %v679, 0
    %v682 = vperm.slane %v679, 1
    %v749 = vunpack.c.l.b16 %v615
    %v750 = vunpack.c.h.b16 %v615
    %v751 = vunpack.c.l.b16 %v616
    %v752 = vunpack.c.h.b16 %v616
    %v753 = vunpack.c.l.b16 %v617
    %v754 = vunpack.c.h.b16 %v617
    %v755 = vunpack.c.l.b16 %v618
    %v756 = vunpack.c.h.b16 %v618
    %v757 = vunpack.c.l.b16 %v619
    %v758 = vunpack.c.h.b16 %v619
    %v759 = vunpack.c.l.b16 %v620
    %v760 = vunpack.c.h.b16 %v620
    %v761 = vunpack.c.l.b16 %v621
    %v762 = vunpack.c.h.b16 %v621
    %v763 = vunpack.c.l.b16 %v622
    %v764 = vunpack.c.h.b16 %v622
    %v765 = vunpack.c.l.b16 %v623
    %v766 = vunpack.c.h.b16 %v623
    %v767 = vunpack.c.l.b16 %v624
    %v768 = vunpack.c.h.b16 %v624
    %v769 = vunpack.c.l.b16 %v625
    %v770 = vunpack.c.h.b16 %v625
    %v771 = vunpack.c.l.b16 %v626
    %v772 = vunpack.c.h.b16 %v626
    %v773 = vunpack.c.l.b16 %v627
    %v774 = vunpack.c.h.b16 %v627
    %v775 = vunpack.c.l.b16 %v628
    %v776 = vunpack.c.h.b16 %v628
    %v777 = vunpack.c.l.b16 %v629
    %v778 = vunpack.c.h.b16 %v629
    %v779 = vunpack.c.l.b16 %v630
    %v780 = vunpack.c.h.b16 %v630
    %v781 = vunpack.c.l.b16 %v631
    %v782 = vunpack.c.h.b16 %v631
    %v783 = vunpack.c.l.b16 %v632
    %v784 = vunpack.c.h.b16 %v632
    %v785 = vunpack.c.l.b16 %v633
    %v786 = vunpack.c.h.b16 %v633
    %v787 = vunpack.c.l.b16 %v634
    %v788 = vunpack.c.h.b16 %v634
    %v789 = vunpack.c.l.b16 %v635
    %v790 = vunpack.c.h.b16 %v635
    %v791 = vunpack.c.l.b16 %v636
    %v792 = vunpack.c.h.b16 %v636
    %v793 = vunpack.c.l.b16 %v637
    %v794 = vunpack.c.h.b16 %v637
    %v795 = vunpack.c.l.b16 %v638
    %v796 = vunpack.c.h.b16 %v638
    %v797 = vunpack.c.l.b16 %v639
    %v798 = vunpack.c.h.b16 %v639
    %v799 = vunpack.c.l.b16 %v640
    %v800 = vunpack.c.h.b16 %v640
    %v801 = vunpack.c.l.b16 %v641
    %v802 = vunpack.c.h.b16 %v641
    %v803 = vunpack.c.l.b16 %v642
    %v804 = vunpack.c.h.b16 %v642
    %v805 = vunpack.c.l.b16 %v643
    %v806 = vunpack.c.h.b16 %v643
    %v807 = vunpack.c.l.b16 %v644
    %v808 = vunpack.c.h.b16 %v644
    %v809 = vunpack.c.l.b16 %v645
    %v810 = vunpack.c.h.b16 %v645
    %v811 = vunpack.c.l.b16 %v646
    %v812 = vunpack.c.h.b16 %v646
    %v813 = vunpack.c.l.b16 %v647
    %v814 = vunpack.c.h.b16 %v647
    %v815 = vunpack.c.l.b16 %v648
    %v816 = vunpack.c.h.b16 %v648
    %v817 = vunpack.c.l.b16 %v649
    %v818 = vunpack.c.h.b16 %v649
    %v819 = vunpack.c.l.b16 %v650
    %v820 = vunpack.c.h.b16 %v650
    %v821 = vunpack.c.l.b16 %v651
    %v822 = vunpack.c.h.b16 %v651
    %v823 = vunpack.c.l.b16 %v652
    %v824 = vunpack.c.h.b16 %v652
    %v825 = vunpack.c.l.b16 %v653
    %v826 = vunpack.c.h.b16 %v653
    %v827 = vunpack.c.l.b16 %v654
    %v828 = vunpack.c.h.b16 %v654
    %v829 = vunpack.c.l.b16 %v655
    %v830 = vunpack.c.h.b16 %v655
    %v831 = vunpack.c.l.b16 %v656
    %v832 = vunpack.c.h.b16 %v656
    %v833 = vunpack.c.l.b16 %v657
    %v834 = vunpack.c.h.b16 %v657
    %v835 = vunpack.c.l.b16 %v658
    %v836 = vunpack.c.h.b16 %v658
    %v837 = vunpack.c.l.b16 %v659
    %v838 = vunpack.c.h.b16 %v659
    %v839 = vunpack.c.l.b16 %v660
    %v840 = vunpack.c.h.b16 %v660
    %v841 = vunpack.c.l.b16 %v661
    %v842 = vunpack.c.h.b16 %v661
    %v843 = vunpack.c.l.b16 %v662
    %v844 = vunpack.c.h.b16 %v662
    %v845 = vunpack.c.l.b16 %v663
    %v846 = vunpack.c.h.b16 %v663
    %v847 = vunpack.c.l.b16 %v664
    %v848 = vunpack.c.h.b16 %v664
    %v849 = vunpack.c.l.b16 %v665
    %v850 = vunpack.c.h.b16 %v665
    %v851 = vunpack.c.l.b16 %v666
    %v852 = vunpack.c.h.b16 %v666
    %v853 = vunpack.c.l.b16 %v667
    %v854 = vunpack.c.h.b16 %v667
    %v855 = vunpack.c.l.b16 %v668
    %v856 = vunpack.c.h.b16 %v668
    %v857 = vunpack.c.l.b16 %v669
    %v858 = vunpack.c.h.b16 %v669
    %v859 = vunpack.c.l.b16 %v670
    %v860 = vunpack.c.h.b16 %v670
    %v861 = vunpack.c.l.b16 %v671
    %v862 = vunpack.c.h.b16 %v671
    %v863 = vunpack.c.l.b16 %v672
    %v864 = vunpack.c.h.b16 %v672
    %v865 = vunpack.c.l.b16 %v673
    %v866 = vunpack.c.h.b16 %v673
    %v867 = vunpack.c.l.b16 %v674
    %v868 = vunpack.c.h.b16 %v674
    %v869 = vunpack.c.l.b16 %v675
    %v870 = vunpack.c.h.b16 %v675
    %v871 = vunpack.c.l.b16 %v676
    %v872 = vunpack.c.h.b16 %v676
    %v873 = vunpack.c.l.b16 %v677
    %v874 = vunpack.c.h.b16 %v677
    %v875 = vunpack.c.l.b16 %v678
    %v876 = vunpack.c.h.b16 %v678
    %v877 = vpack.c.b16 %v751, %v749
    %v878 = vpack.c.b16 %v752, %v750
    %v879 = vpack.c.b16 %v755, %v753
    %v880 = vpack.c.b16 %v756, %v754
    %v881 = vpack.c.b16 %v759, %v757
    %v882 = vpack.c.b16 %v760, %v758
    %v883 = vpack.c.b16 %v763, %v761
    %v884 = vpack.c.b16 %v764, %v762
    %v885 = vpack.c.b16 %v767, %v765
    %v886 = vpack.c.b16 %v768, %v766
    %v887 = vpack.c.b16 %v771, %v769
    %v888 = vpack.c.b16 %v772, %v770
    %v889 = vpack.c.b16 %v775, %v773
    %v890 = vpack.c.b16 %v776, %v774
    %v891 = vpack.c.b16 %v779, %v777
    %v892 = vpack.c.b16 %v780, %v778
    %v893 = vpack.c.b16 %v783, %v781
    %v894 = vpack.c.b16 %v784, %v782
    %v895 = vpack.c.b16 %v787, %v785
    %v896 = vpack.c.b16 %v788, %v786
    %v897 = vpack.c.b16 %v791, %v789
    %v898 = vpack.c.b16 %v792, %v790
    %v899 = vpack.c.b16 %v795, %v793
    %v900 = vpack.c.b16 %v796, %v794
    %v901 = vpack.c.b16 %v799, %v797
    %v902 = vpack.c.b16 %v800, %v798
    %v903 = vpack.c.b16 %v803, %v801
    %v904 = vpack.c.b16 %v804, %v802
    %v905 = vpack.c.b16 %v807, %v805
    %v906 = vpack.c.b16 %v808, %v806
    %v907 = vpack.c.b16 %v811, %v809
    %v908 = vpack.c.b16 %v812, %v810
    %v909 = vpack.c.b16 %v815, %v813
    %v910 = vpack.c.b16 %v816, %v814
    %v911 = vpack.c.b16 %v819, %v817
    %v912 = vpack.c.b16 %v820, %v818
    %v913 = vpack.c.b16 %v823, %v821
    %v914 = vpack.c.b16 %v824, %v822
    %v915 = vpack.c.b16 %v827, %v825
    %v916 = vpack.c.b16 %v828, %v826
    %v917 = vpack.c.b16 %v831, %v829
    %v918 = vpack.c.b16 %v832, %v830
    %v919 = vpack.c.b16 %v835, %v833
    %v920 = vpack.c.b16 %v836, %v834
    %v921 = vpack.c.b16 %v839, %v837
    %v922 = vpack.c.b16 %v840, %v838
    %v923 = vpack.c.b16 %v843, %v841
    %v924 = vpack.c.b16 %v844, %v842
    %v925 = vpack.c.b16 %v847, %v845
    %v926 = vpack.c.b16 %v848, %v846
    %v927 = vpack.c.b16 %v851, %v849
    %v928 = vpack.c.b16 %v852, %v850
    %v929 = vpack.c.b16 %v855, %v853
    %v930 = vpack.c.b16 %v856, %v854
    %v931 = vpack.c.b16 %v859, %v857
    %v932 = vpack.c.b16 %v860, %v858
    %v933 = vpack.c.b16 %v863, %v861
    %v934 = vpack.c.b16 %v864, %v862
    %v935 = vpack.c.b16 %v867, %v865
    %v936 = vpack.c.b16 %v868, %v866
    %v937 = vpack.c.b16 %v871, %v869
    %v938 = vpack.c.b16 %v872, %v870
    %v939 = vpack.c.b16 %v875, %v873
    %v940 = vpack.c.b16 %v876, %v874
    %1005 = vmatpush.bf16.msra.mxu0 %v891
    %1006 = vmatpush.bf16.msra.mxu0 %v889
    %1007 = vmatpush.bf16.msra.mxu0 %v887
    %1008 = vmatpush.bf16.msra.mxu0 %v885
    %1009 = vmatpush.bf16.msra.mxu0 %v883
    %1010 = vmatpush.bf16.msra.mxu0 %v881
    %1011 = vmatpush.bf16.msra.mxu0 %v879
    %1012 = vmatpush.bf16.msra.mxu0 %v877
    %1013 = vmatmul.bf16.gmra.mxu0 %v611
    %v1014 = vpop.f32.mrf.mxu0
    %v1015 = vadd.f32 %v681, %v1014
    %v1016 = vpop.f32.mrf.mxu0
    %1017 = vdwg.mxu0
    %1018 = vmatpush.bf16.msra.mxu0 %v907
    %1019 = vmatpush.bf16.msra.mxu0 %v905
    %1020 = vmatpush.bf16.msra.mxu0 %v903
    %1021 = vmatpush.bf16.msra.mxu0 %v901
    %1022 = vmatpush.bf16.msra.mxu0 %v899
    %1023 = vmatpush.bf16.msra.mxu0 %v897
    %1024 = vmatpush.bf16.msra.mxu0 %v895
    %1025 = vmatpush.bf16.msra.mxu0 %v893
    %1026 = vmatmul.bf16.gmra.mxu0 %v612
    %v1027 = vpop.f32.mrf.mxu0
    %v1028 = vadd.f32 %v1015, %v1027
    %v1029 = vpop.f32.mrf.mxu0
    %1030 = vdwg.mxu0
    %1031 = vmatpush.bf16.msra.mxu0 %v923
    %1032 = vmatpush.bf16.msra.mxu0 %v921
    %1033 = vmatpush.bf16.msra.mxu0 %v919
    %1034 = vmatpush.bf16.msra.mxu0 %v917
    %1035 = vmatpush.bf16.msra.mxu0 %v915
    %1036 = vmatpush.bf16.msra.mxu0 %v913
    %1037 = vmatpush.bf16.msra.mxu0 %v911
    %1038 = vmatpush.bf16.msra.mxu0 %v909
    %1039 = vmatmul.bf16.gmra.mxu0 %v613
    %v1040 = vpop.f32.mrf.mxu0
    %v1041 = vadd.f32 %v1028, %v1040
    %v1042 = vpop.f32.mrf.mxu0
    %1043 = vdwg.mxu0
    %1044 = vmatpush.bf16.msra.mxu0 %v939
    %1045 = vmatpush.bf16.msra.mxu0 %v937
    %1046 = vmatpush.bf16.msra.mxu0 %v935
    %1047 = vmatpush.bf16.msra.mxu0 %v933
    %1048 = vmatpush.bf16.msra.mxu0 %v931
    %1049 = vmatpush.bf16.msra.mxu0 %v929
    %1050 = vmatpush.bf16.msra.mxu0 %v927
    %1051 = vmatpush.bf16.msra.mxu0 %v925
    %1052 = vmatmul.bf16.gmra.mxu0 %v614
    %v1053 = vpop.f32.mrf.mxu0
    %v1054 = vadd.f32 %v1041, %v1053
    %v1055 = vpop.f32.mrf.mxu0
    %1056 = vdwg.mxu0
    %1057 = vmatpush.bf16.msra.mxu0 %v892
    %1058 = vmatpush.bf16.msra.mxu0 %v890
    %1059 = vmatpush.bf16.msra.mxu0 %v888
    %1060 = vmatpush.bf16.msra.mxu0 %v886
    %1061 = vmatpush.bf16.msra.mxu0 %v884
    %1062 = vmatpush.bf16.msra.mxu0 %v882
    %1063 = vmatpush.bf16.msra.mxu0 %v880
    %1064 = vmatpush.bf16.msra.mxu0 %v878
    %1065 = vmatmul.bf16.gmra.mxu0 %v611
    %v1066 = vpop.f32.mrf.mxu0
    %v1067 = vadd.f32 %v682, %v1066
    %v1068 = vpop.f32.mrf.mxu0
    %1069 = vdwg.mxu0
    %1070 = vmatpush.bf16.msra.mxu0 %v908
    %1071 = vmatpush.bf16.msra.mxu0 %v906
    %1072 = vmatpush.bf16.msra.mxu0 %v904
    %1073 = vmatpush.bf16.msra.mxu0 %v902
    %1074 = vmatpush.bf16.msra.mxu0 %v900
    %1075 = vmatpush.bf16.msra.mxu0 %v898
    %1076 = vmatpush.bf16.msra.mxu0 %v896
    %1077 = vmatpush.bf16.msra.mxu0 %v894
    %1078 = vmatmul.bf16.gmra.mxu0 %v612
    %v1079 = vpop.f32.mrf.mxu0
    %v1080 = vadd.f32 %v1067, %v1079
    %v1081 = vpop.f32.mrf.mxu0
    %1082 = vdwg.mxu0
    %1083 = vmatpush.bf16.msra.mxu0 %v924
    %1084 = vmatpush.bf16.msra.mxu0 %v922
    %1085 = vmatpush.bf16.msra.mxu0 %v920
    %1086 = vmatpush.bf16.msra.mxu0 %v918
    %1087 = vmatpush.bf16.msra.mxu0 %v916
    %1088 = vmatpush.bf16.msra.mxu0 %v914
    %1089 = vmatpush.bf16.msra.mxu0 %v912
    %1090 = vmatpush.bf16.msra.mxu0 %v910
    %1091 = vmatmul.bf16.gmra.mxu0 %v613
    %v1092 = vpop.f32.mrf.mxu0
    %v1093 = vadd.f32 %v1080, %v1092
    %v1094 = vpop.f32.mrf.mxu0
    %1095 = vdwg.mxu0
    %1096 = vmatpush.bf16.msra.mxu0 %v940
    %1097 = vmatpush.bf16.msra.mxu0 %v938
    %1098 = vmatpush.bf16.msra.mxu0 %v936
    %1099 = vmatpush.bf16.msra.mxu0 %v934
    %1100 = vmatpush.bf16.msra.mxu0 %v932
    %1101 = vmatpush.bf16.msra.mxu0 %v930
    %1102 = vmatpush.bf16.msra.mxu0 %v928
    %1103 = vmatpush.bf16.msra.mxu0 %v926
    %1104 = vmatmul.bf16.gmra.mxu0 %v614
    %v1105 = vpop.f32.mrf.mxu0
    %v1106 = vadd.f32 %v1093, %v1105
    %v1107 = vpop.f32.mrf.mxu0
    %1108 = vdwg.mxu0
    %v1109 = vmax.f32 %v1054, 0.0
    %v1110 = vmax.f32 %v1106, 0.0
    %v1111 = vpack.c.bf16 %v1109, %v1109
    %v1112 = vpack.c.bf16 %v1110, %v1110
    %v1113 = vld [vmem:[#allocation10] sm:$0xf]
    %v1114 = vld [vmem:[#allocation10 + $0x4] sm:$0xf]
    %v1115 = vld [vmem:[#allocation10 + $0x8] sm:$0xf]
    %v1116 = vld [vmem:[#allocation10 + $0xc] sm:$0xf]
    %v1117 = vld [vmem:[#allocation10 + $0x10] sm:$0xf]
    %v1118 = vld [vmem:[#allocation10 + $0x14] sm:$0xf]
    %v1119 = vld [vmem:[#allocation10 + $0x18] sm:$0xf]
    %v1120 = vld [vmem:[#allocation10 + $0x1c] sm:$0xf]
    %v1121 = vld [vmem:[#allocation10 + $0x20] sm:$0xf]
    %v1122 = vld [vmem:[#allocation10 + $0x24] sm:$0xf]
    %v1123 = vld [vmem:[#allocation10 + $0x28] sm:$0xf]
    %v1124 = vld [vmem:[#allocation10 + $0x2c] sm:$0xf]
    %v1125 = vld [vmem:[#allocation10 + $0x30] sm:$0xf]
    %v1126 = vld [vmem:[#allocation10 + $0x34] sm:$0xf]
    %v1127 = vld [vmem:[#allocation10 + $0x38] sm:$0xf]
    %v1128 = vld [vmem:[#allocation10 + $0x3c] sm:$0xf]
    %v1129 = vld [vmem:[#allocation10 + $0x40] sm:$0xf]
    %v1130 = vld [vmem:[#allocation10 + $0x44] sm:$0xf]
    %v1131 = vld [vmem:[#allocation10 + $0x48] sm:$0xf]
    %v1132 = vld [vmem:[#allocation10 + $0x4c] sm:$0xf]
    %v1133 = vld [vmem:[#allocation10 + $0x50] sm:$0xf]
    %v1134 = vld [vmem:[#allocation10 + $0x54] sm:$0xf]
    %v1135 = vld [vmem:[#allocation10 + $0x58] sm:$0xf]
    %v1136 = vld [vmem:[#allocation10 + $0x5c] sm:$0xf]
    %v1137 = vld [vmem:[#allocation10 + $0x60] sm:$0xf]
    %v1138 = vld [vmem:[#allocation10 + $0x64] sm:$0xf]
    %v1139 = vld [vmem:[#allocation10 + $0x68] sm:$0xf]
    %v1140 = vld [vmem:[#allocation10 + $0x6c] sm:$0xf]
    %v1141 = vld [vmem:[#allocation10 + $0x70] sm:$0xf]
    %v1142 = vld [vmem:[#allocation10 + $0x74] sm:$0xf]
    %v1143 = vld [vmem:[#allocation10 + $0x78] sm:$0xf]
    %v1144 = vld [vmem:[#allocation10 + $0x7c] sm:$0xf]
    %v1145 = vld [vmem:[%s6] sm:$0x1]
    %v1147 = vperm.slane %v1145, 0
    %v1181 = vunpack.c.l.b16 %v1113
    %v1182 = vunpack.c.l.b16 %v1114
    %v1183 = vunpack.c.l.b16 %v1115
    %v1184 = vunpack.c.l.b16 %v1116
    %v1185 = vunpack.c.l.b16 %v1117
    %v1186 = vunpack.c.l.b16 %v1118
    %v1187 = vunpack.c.l.b16 %v1119
    %v1188 = vunpack.c.l.b16 %v1120
    %v1189 = vunpack.c.l.b16 %v1121
    %v1190 = vunpack.c.l.b16 %v1122
    %v1191 = vunpack.c.l.b16 %v1123
    %v1192 = vunpack.c.l.b16 %v1124
    %v1193 = vunpack.c.l.b16 %v1125
    %v1194 = vunpack.c.l.b16 %v1126
    %v1195 = vunpack.c.l.b16 %v1127
    %v1196 = vunpack.c.l.b16 %v1128
    %v1197 = vunpack.c.l.b16 %v1129
    %v1198 = vunpack.c.l.b16 %v1130
    %v1199 = vunpack.c.l.b16 %v1131
    %v1200 = vunpack.c.l.b16 %v1132
    %v1201 = vunpack.c.l.b16 %v1133
    %v1202 = vunpack.c.l.b16 %v1134
    %v1203 = vunpack.c.l.b16 %v1135
    %v1204 = vunpack.c.l.b16 %v1136
    %v1205 = vunpack.c.l.b16 %v1137
    %v1206 = vunpack.c.l.b16 %v1138
    %v1207 = vunpack.c.l.b16 %v1139
    %v1208 = vunpack.c.l.b16 %v1140
    %v1209 = vunpack.c.l.b16 %v1141
    %v1210 = vunpack.c.l.b16 %v1142
    %v1211 = vunpack.c.l.b16 %v1143
    %v1212 = vunpack.c.l.b16 %v1144
    %v1213 = vpack.c.b16 %v1182, %v1181
    %v1214 = vpack.c.b16 %v1184, %v1183
    %v1215 = vpack.c.b16 %v1186, %v1185
    %v1216 = vpack.c.b16 %v1188, %v1187
    %v1217 = vpack.c.b16 %v1190, %v1189
    %v1218 = vpack.c.b16 %v1192, %v1191
    %v1219 = vpack.c.b16 %v1194, %v1193
    %v1220 = vpack.c.b16 %v1196, %v1195
    %v1221 = vpack.c.b16 %v1198, %v1197
    %v1222 = vpack.c.b16 %v1200, %v1199
    %v1223 = vpack.c.b16 %v1202, %v1201
    %v1224 = vpack.c.b16 %v1204, %v1203
    %v1225 = vpack.c.b16 %v1206, %v1205
    %v1226 = vpack.c.b16 %v1208, %v1207
    %v1227 = vpack.c.b16 %v1210, %v1209
    %v1228 = vpack.c.b16 %v1212, %v1211
    %1245 = vmatpush.bf16.msra.mxu0 %v1220
    %1246 = vmatpush.bf16.msra.mxu0 %v1219
    %1247 = vmatpush.bf16.msra.mxu0 %v1218
    %1248 = vmatpush.bf16.msra.mxu0 %v1217
    %1249 = vmatpush.bf16.msra.mxu0 %v1216
    %1250 = vmatpush.bf16.msra.mxu0 %v1215
    %1251 = vmatpush.bf16.msra.mxu0 %v1214
    %1252 = vmatpush.bf16.msra.mxu0 %v1213
    %1253 = vmatmul.bf16.gmra.mxu0 %v1111
    %v1254 = vpop.f32.mrf.mxu0
    %v1255 = vadd.f32 %v1147, %v1254
    %v1256 = vpop.f32.mrf.mxu0
    %1257 = vdwg.mxu0
    %1258 = vmatpush.bf16.msra.mxu0 %v1228
    %1259 = vmatpush.bf16.msra.mxu0 %v1227
    %1260 = vmatpush.bf16.msra.mxu0 %v1226
    %1261 = vmatpush.bf16.msra.mxu0 %v1225
    %1262 = vmatpush.bf16.msra.mxu0 %v1224
    %1263 = vmatpush.bf16.msra.mxu0 %v1223
    %1264 = vmatpush.bf16.msra.mxu0 %v1222
    %1265 = vmatpush.bf16.msra.mxu0 %v1221
    %1266 = vmatmul.bf16.gmra.mxu0 %v1112
    %v1267 = vpop.f32.mrf.mxu0
    %v1268 = vadd.f32 %v1255, %v1267
    %v1269 = vpop.f32.mrf.mxu0
    %1270 = vdwg.mxu0
    %1271 = vst [vmem:[#allocation11] sm:$0xff] %v1268
    // Predicated region
    $region50: #{tpu_custom_call.1} parent=1 // pred_check
      _
    $region51: #{tpu_custom_call.1} parent=1 // pred_check_branch
      %1273 = sbr.rel (0) target = $region53
    $region52: #{tpu_custom_call.1} parent=1 // pred_region
      %1275 = vsyncadd [#allocation4], 0
      %s1277 = sshll.u32 [#allocation11], 4
      %s1278 = int_to_ptr.vmem [resolvable:$true] %s1277
      %s1279 = sshll.u32 %s7, 4
      %s1280 = int_to_ptr.hbm [resolvable:$true] %s1279
      %1282 = dma.vmem_to_hbm [thread:$0]  %s1278, 128, %s1280, [#allocation4]
    $region53: #{tpu_custom_call.1} parent=1 // pred_fallthru
      _
    // Predicated region
    $region54: #{tpu_custom_call.1} parent=1 // pred_check
      _
    $region55: #{tpu_custom_call.1} parent=1 // pred_check_branch
      %1284 = sbr.rel (0) target = $region57
    $region56: #{tpu_custom_call.1} parent=1 // pred_region
      %1286 = dma.done [#allocation4], 128
    $region57: #{tpu_custom_call.1} parent=1 // pred_fallthru
      _
    %1287 = vsyncpa [#allocation3], 1
    %1288 = vsyncpa [#allocation6], 1
    %1289 = vsyncpa [#allocation9], 1
    %1290 = vsyncpa [#allocation4], 1

</llo_original>
